<compile_context>
chip_gen: v7x
topology: tpu7x:2x2x1
jax: 0.10.0
libtpu: 0.0.40
codegen_flags: <defaults>
</compile_context>

<pallas_src>
import jax
import jax.numpy as jnp
from jax.experimental import pallas as pl
from jax.experimental.pallas import tpu as pltpu

_LANE = 128
_SUBLANE = 8
_DEFAULT_BLOCK_B = 512  # multiple of 256 (v6e/v7x MXU) and 128 (v5e MXU)


def _round_up(n, m):
    return ((n + m - 1) // m) * m


def _toy_nn_kernel(alpha_ref,                       # (2,) f32 in SMEM
                   x_ref, w1_ref, b1_ref, w2_ref, b2_ref, w3_ref, b3_ref,
                   o_ref):
    """Full forward for one batch tile: 3 matmuls + biases + 2 PReLUs."""
    a1 = alpha_ref[0]
    a2 = alpha_ref[1]

    def prelu(v, a):                                # f32 elementwise (v5e-safe)
        return jnp.where(v >= 0.0, v, a * v)

    # MXU operands in bf16, accumulate in f32.
    h = jnp.dot(x_ref[...].astype(jnp.bfloat16), w1_ref[...],
                preferred_element_type=jnp.float32)
    h = prelu(h + b1_ref[...], a1)
    h = jnp.dot(h.astype(jnp.bfloat16), w2_ref[...],
                preferred_element_type=jnp.float32)
    h = prelu(h + b2_ref[...], a2)
    h = jnp.dot(h.astype(jnp.bfloat16), w3_ref[...],
                preferred_element_type=jnp.float32)
    o_ref[...] = (h + b3_ref[...]).astype(o_ref.dtype)


def prepare_params(params):
    """One-time parameter prep (hoisted out of the forward call path).

    PyTorch nn.Linear weights are [out, in]; we store them transposed as
    [in, out] and zero-pad the lane (out) axes to multiples of 128. Zero
    padding is exact because PReLU(0) == 0 and padded weight/bias lanes are 0.
    """
    w1, b1 = params["w1"], params["b1"]          # [5, d_in], [5]
    w2, b2 = params["w2"], params["b2"]          # [10, 5],  [10]
    w3, b3 = params["w3"], params["b3"]          # [d_out, 10], [d_out]

    d_in = w1.shape[1]
    h1, h2, d_out = w1.shape[0], w2.shape[0], w3.shape[0]
    H1P = _round_up(h1, _LANE)
    H2P = _round_up(h2, _LANE)
    DOP = _round_up(d_out, _LANE)

    def pad2(a, rows, cols):
        return jnp.pad(a, ((0, rows - a.shape[0]), (0, cols - a.shape[1])))

    return dict(
        w1=pad2(w1.T.astype(jnp.float32), d_in, H1P).astype(jnp.bfloat16),
        w2=pad2(w2.T.astype(jnp.float32), H1P, H2P).astype(jnp.bfloat16),
        w3=pad2(w3.T.astype(jnp.float32), H2P, DOP).astype(jnp.bfloat16),
        b1=pad2(b1.reshape(1, -1).astype(jnp.float32), 1, H1P),
        b2=pad2(b2.reshape(1, -1).astype(jnp.float32), 1, H2P),
        b3=pad2(b3.reshape(1, -1).astype(jnp.float32), 1, DOP),
        alphas=jnp.array([params["alpha1"], params["alpha2"]], jnp.float32),
        d_out=int(d_out),
    )


def toy_nn_forward(x, prepped, *, block_b=_DEFAULT_BLOCK_B):
    """x: [B, d_in] float32. `prepped` comes from prepare_params()."""
    B, d_in = x.shape
    H1P = prepped["w1"].shape[1]
    H2P = prepped["w2"].shape[1]
    DOP = prepped["w3"].shape[1]
    d_out = prepped["d_out"]

    if x.dtype != jnp.float32:
        x = x.astype(jnp.float32)

    # Batch tile: <= block_b rows (v7x VMEM headroom), sublane aligned.
    TB = min(block_b, _round_up(B, _SUBLANE))
    BP = _round_up(B, TB)
    if BP != B:
        # Sublane-only pad; the lane axis of x is never padded.
        x = jnp.pad(x, ((0, BP - B), (0, 0)))
    nb = BP // TB

    smem = pl.BlockSpec(memory_space=pltpu.MemorySpace.SMEM)
    const2d = lambda i: (0, 0)                     # weights/biases: VMEM-resident

    out_padded = pl.pallas_call(
        _toy_nn_kernel,
        out_shape=jax.ShapeDtypeStruct((BP, DOP), jnp.float32),
        grid=(nb,),
        in_specs=[
            smem,                                              # alphas (2,)
            pl.BlockSpec((TB, d_in), lambda i: (i, 0)),        # x tile
            pl.BlockSpec((d_in, H1P), const2d),                # w1
            pl.BlockSpec((1, H1P), const2d),                   # b1
            pl.BlockSpec((H1P, H2P), const2d),                 # w2
            pl.BlockSpec((1, H2P), const2d),                   # b2
            pl.BlockSpec((H2P, DOP), const2d),                 # w3
            pl.BlockSpec((1, DOP), const2d),                   # b3
        ],
        out_specs=pl.BlockSpec((TB, DOP), lambda i: (i, 0)),
        compiler_params=pltpu.CompilerParams(
            dimension_semantics=("parallel",)),    # v7x: 2 TCs share batch grid
    )(prepped["alphas"], x,
      prepped["w1"], prepped["b1"], prepped["w2"], prepped["b2"],
      prepped["w3"], prepped["b3"])

    # Thin slice back to the logical shape (kernel stores stay lane-dense).
    return out_padded[:B, :d_out]


if __name__ == "__main__":
    key = jax.random.PRNGKey(0)
    input_size, output_size = 16, 4
    batch = 2

    ks = jax.random.split(key, 8)

    def lin_init(kw, kb, fan_in, fan_out):
        # PyTorch nn.Linear default init: U(-1/sqrt(fan_in), 1/sqrt(fan_in))
        bound = 1.0 / float(fan_in) ** 0.5
        w = jax.random.uniform(kw, (fan_out, fan_in), jnp.float32, -bound, bound)
        b = jax.random.uniform(kb, (fan_out,), jnp.float32, -bound, bound)
        return w, b

    w1, b1 = lin_init(ks[0], ks[1], input_size, 5)
    w2, b2 = lin_init(ks[2], ks[3], 5, 10)
    w3, b3 = lin_init(ks[4], ks[5], 10, output_size)
    params = dict(w1=w1, b1=b1, w2=w2, b2=b2, w3=w3, b3=b3,
                  alpha1=0.25, alpha2=0.25)   # nn.PReLU() default weight

    prepped = prepare_params(params)          # one-time prep, out of call path

    def ref_forward(xx):
        def prelu_ref(v, a):
            return jnp.where(v >= 0, v, a * v)
        r = prelu_ref(xx @ w1.T + b1, 0.25)
        r = prelu_ref(r @ w2.T + b2, 0.25)
        return r @ w3.T + b3

    # Small batch (matches the module's toy sizes).
    x = jax.random.normal(ks[6], (batch, input_size), jnp.float32)
    y = jax.block_until_ready(toy_nn_forward(x, prepped))
    assert y.shape == (batch, output_size)
    # bf16 MXU operands -> loosened tolerance vs the f32 reference.
    assert jnp.allclose(y, ref_forward(x), atol=2e-2, rtol=2e-2), \
        "Pallas output mismatch vs reference (small batch)"

    # Larger batch exercising the batch grid (2 tiles of 512 rows).
    xl = jax.random.normal(ks[7], (1024, input_size), jnp.float32)
    yl = jax.block_until_ready(toy_nn_forward(xl, prepped))
    assert yl.shape == (1024, output_size)
    assert jnp.allclose(yl, ref_forward(xl), atol=2e-2, rtol=2e-2), \
        "Pallas output mismatch vs reference (large batch)"

    print("KERNEL_OK")
</pallas_src>

<mosaic_0001>
module attributes {stable_mosaic.version = 11 : i64} {
  func.func @_toy_nn_kernel(%arg0: i32, %arg1: memref<2xf32, #tpu.memory_space<smem>>, %arg2: memref<8x16xf32, #tpu.memory_space<vmem>>, %arg3: memref<16x128xbf16, #tpu.memory_space<vmem>>, %arg4: memref<1x128xf32, #tpu.memory_space<vmem>>, %arg5: memref<128x128xbf16, #tpu.memory_space<vmem>>, %arg6: memref<1x128xf32, #tpu.memory_space<vmem>>, %arg7: memref<128x128xbf16, #tpu.memory_space<vmem>>, %arg8: memref<1x128xf32, #tpu.memory_space<vmem>>, %arg9: memref<8x128xf32, #tpu.memory_space<vmem>>) attributes {dimension_semantics = [#tpu.dimension_semantics<parallel>], iteration_bounds = array<i64: 1>, scalar_prefetch = 0 : i64, scratch_operands = 0 : i64, tpu.core_type = #tpu.core_type<tc>, window_params = [{transform_indices = @transform_0, window_bounds = array<i64: 2>}, {transform_indices = @transform_1, window_bounds = array<i64: 8, 16>}, {pipeline_mode = #tpu.pipeline_mode<synchronous>, transform_indices = @transform_2, window_bounds = array<i64: 16, 128>}, {pipeline_mode = #tpu.pipeline_mode<synchronous>, transform_indices = @transform_3, window_bounds = array<i64: 1, 128>}, {pipeline_mode = #tpu.pipeline_mode<synchronous>, transform_indices = @transform_4, window_bounds = array<i64: 128, 128>}, {pipeline_mode = #tpu.pipeline_mode<synchronous>, transform_indices = @transform_5, window_bounds = array<i64: 1, 128>}, {pipeline_mode = #tpu.pipeline_mode<synchronous>, transform_indices = @transform_6, window_bounds = array<i64: 128, 128>}, {pipeline_mode = #tpu.pipeline_mode<synchronous>, transform_indices = @transform_7, window_bounds = array<i64: 1, 128>}, {transform_indices = @transform_8, window_bounds = array<i64: 8, 128>}]} {
    %c0 = arith.constant 0 : index
    %0 = memref.load %arg1[%c0] : memref<2xf32, #tpu.memory_space<smem>>
    %c1 = arith.constant 1 : index
    %1 = memref.load %arg1[%c1] : memref<2xf32, #tpu.memory_space<smem>>
    %c0_0 = arith.constant 0 : index
    %c0_1 = arith.constant 0 : index
    %2 = vector.load %arg2[%c0_0, %c0_1] : memref<8x16xf32, #tpu.memory_space<vmem>>, vector<8x16xf32>
    %3 = arith.truncf %2 : vector<8x16xf32> to vector<8x16xbf16>
    %c0_2 = arith.constant 0 : index
    %c0_3 = arith.constant 0 : index
    %4 = vector.load %arg3[%c0_2, %c0_3] : memref<16x128xbf16, #tpu.memory_space<vmem>>, vector<16x128xbf16>
    %cst = arith.constant dense<0.000000e+00> : vector<8x128xf32>
    %5 = tpu.matmul %3, %4, %cst {dimension_numbers = #tpu.dot_dimension_numbers<[1], [0], [0], [1], [0, 0, 1, 1], [], []>} : vector<8x16xbf16>, vector<16x128xbf16>, vector<8x128xf32> -> vector<8x128xf32>
    %c0_4 = arith.constant 0 : index
    %c0_5 = arith.constant 0 : index
    %6 = vector.load %arg4[%c0_4, %c0_5] : memref<1x128xf32, #tpu.memory_space<vmem>>, vector<1x128xf32>
    %7 = vector.broadcast %6 : vector<1x128xf32> to vector<8x128xf32>
    %8 = arith.addf %5, %7 : vector<8x128xf32>
    %cst_6 = arith.constant 0.000000e+00 : f32
    %9 = vector.broadcast %cst_6 : f32 to vector<8x128xf32>
    %10 = arith.cmpf oge, %8, %9 : vector<8x128xf32>
    %11 = vector.broadcast %0 : f32 to vector<8x128xf32>
    %12 = arith.mulf %11, %8 : vector<8x128xf32>
    %13 = arith.select %10, %8, %12 : vector<8x128xi1>, vector<8x128xf32>
    %14 = arith.truncf %13 : vector<8x128xf32> to vector<8x128xbf16>
    %c0_7 = arith.constant 0 : index
    %c0_8 = arith.constant 0 : index
    %15 = vector.load %arg5[%c0_7, %c0_8] : memref<128x128xbf16, #tpu.memory_space<vmem>>, vector<128x128xbf16>
    %cst_9 = arith.constant dense<0.000000e+00> : vector<8x128xf32>
    %16 = tpu.matmul %14, %15, %cst_9 {dimension_numbers = #tpu.dot_dimension_numbers<[1], [0], [0], [1], [0, 0, 1, 1], [], []>} : vector<8x128xbf16>, vector<128x128xbf16>, vector<8x128xf32> -> vector<8x128xf32>
    %c0_10 = arith.constant 0 : index
    %c0_11 = arith.constant 0 : index
    %17 = vector.load %arg6[%c0_10, %c0_11] : memref<1x128xf32, #tpu.memory_space<vmem>>, vector<1x128xf32>
    %18 = vector.broadcast %17 : vector<1x128xf32> to vector<8x128xf32>
    %19 = arith.addf %16, %18 : vector<8x128xf32>
    %cst_12 = arith.constant 0.000000e+00 : f32
    %20 = vector.broadcast %cst_12 : f32 to vector<8x128xf32>
    %21 = arith.cmpf oge, %19, %20 : vector<8x128xf32>
    %22 = vector.broadcast %1 : f32 to vector<8x128xf32>
    %23 = arith.mulf %22, %19 : vector<8x128xf32>
    %24 = arith.select %21, %19, %23 : vector<8x128xi1>, vector<8x128xf32>
    %25 = arith.truncf %24 : vector<8x128xf32> to vector<8x128xbf16>
    %c0_13 = arith.constant 0 : index
    %c0_14 = arith.constant 0 : index
    %26 = vector.load %arg7[%c0_13, %c0_14] : memref<128x128xbf16, #tpu.memory_space<vmem>>, vector<128x128xbf16>
    %cst_15 = arith.constant dense<0.000000e+00> : vector<8x128xf32>
    %27 = tpu.matmul %25, %26, %cst_15 {dimension_numbers = #tpu.dot_dimension_numbers<[1], [0], [0], [1], [0, 0, 1, 1], [], []>} : vector<8x128xbf16>, vector<128x128xbf16>, vector<8x128xf32> -> vector<8x128xf32>
    %c0_16 = arith.constant 0 : index
    %c0_17 = arith.constant 0 : index
    %28 = vector.load %arg8[%c0_16, %c0_17] : memref<1x128xf32, #tpu.memory_space<vmem>>, vector<1x128xf32>
    %29 = vector.broadcast %28 : vector<1x128xf32> to vector<8x128xf32>
    %30 = arith.addf %27, %29 : vector<8x128xf32>
    %c0_18 = arith.constant 0 : index
    %c0_19 = arith.constant 0 : index
    %31 = vector.load %arg9[%c0_18, %c0_19] : memref<8x128xf32, #tpu.memory_space<vmem>>, vector<8x128xf32>
    tpu.vector_store %arg9[%c0_18, %c0_19], %30 {strides = array<i32>} : memref<8x128xf32, #tpu.memory_space<vmem>>, vector<8x128xf32>,
    return
  }
  func.func @transform_0(%arg0: i32) -> i32 {
    %c0_i32 = arith.constant 0 : i32
    %c0_i32_0 = arith.constant 0 : i32
    return %c0_i32 : i32
  }
  func.func @transform_1(%arg0: i32) -> (i32, i32) {
    %c0_i32 = arith.constant 0 : i32
    %c0_i32_0 = arith.constant 0 : i32
    return %arg0, %c0_i32 : i32, i32
  }
  func.func @transform_2(%arg0: i32) -> (i32, i32) {
    %c0_i32 = arith.constant 0 : i32
    %c0_i32_0 = arith.constant 0 : i32
    %c0_i32_1 = arith.constant 0 : i32
    return %c0_i32, %c0_i32_0 : i32, i32
  }
  func.func @transform_3(%arg0: i32) -> (i32, i32) {
    %c0_i32 = arith.constant 0 : i32
    %c0_i32_0 = arith.constant 0 : i32
    %c0_i32_1 = arith.constant 0 : i32
    return %c0_i32, %c0_i32_0 : i32, i32
  }
  func.func @transform_4(%arg0: i32) -> (i32, i32) {
    %c0_i32 = arith.constant 0 : i32
    %c0_i32_0 = arith.constant 0 : i32
    %c0_i32_1 = arith.constant 0 : i32
    return %c0_i32, %c0_i32_0 : i32, i32
  }
  func.func @transform_5(%arg0: i32) -> (i32, i32) {
    %c0_i32 = arith.constant 0 : i32
    %c0_i32_0 = arith.constant 0 : i32
    %c0_i32_1 = arith.constant 0 : i32
    return %c0_i32, %c0_i32_0 : i32, i32
  }
  func.func @transform_6(%arg0: i32) -> (i32, i32) {
    %c0_i32 = arith.constant 0 : i32
    %c0_i32_0 = arith.constant 0 : i32
    %c0_i32_1 = arith.constant 0 : i32
    return %c0_i32, %c0_i32_0 : i32, i32
  }
  func.func @transform_7(%arg0: i32) -> (i32, i32) {
    %c0_i32 = arith.constant 0 : i32
    %c0_i32_0 = arith.constant 0 : i32
    %c0_i32_1 = arith.constant 0 : i32
    return %c0_i32, %c0_i32_0 : i32, i32
  }
  func.func @transform_8(%arg0: i32) -> (i32, i32) {
    %c0_i32 = arith.constant 0 : i32
    %c0_i32_0 = arith.constant 0 : i32
    return %arg0, %c0_i32 : i32, i32
  }
}

</mosaic_0001>

<llo_original>
// kernel: tpu_custom_call.1
$region0: #{tpu_custom_call.1}
  #allocation0 [shape = 'u32[]', space=smem, size = 0x4, offset = 0x4, fixed_abs, tag = 'smem constant byte address 0x4 - core index']
  #allocation1 [shape = 'u32[144,128]{1,0:T(1,128)}', space=vmem, size = 0x12000, scoped, tag = 'internal scratch']
  %s0 = inlined_call_operand.hbm [shape: f32[2], index: 0, kind: input, shape index: {}]
  %s1 = inlined_call_operand.hbm [shape: f32[8,16], index: 1, kind: input, shape index: {}]
  %s2 = inlined_call_operand.hbm [shape: bf16[16,128], index: 2, kind: input, shape index: {}]
  %s3 = inlined_call_operand.vmem [shape: f32[1,128], index: 3, kind: input, shape index: {}]
  %s4 = inlined_call_operand.hbm [shape: bf16[128,128], index: 4, kind: input, shape index: {}]
  %s5 = inlined_call_operand.vmem [shape: f32[1,128], index: 5, kind: input, shape index: {}]
  %s6 = inlined_call_operand.hbm [shape: bf16[128,128], index: 6, kind: input, shape index: {}]
  %s7 = inlined_call_operand.vmem [shape: f32[1,128], index: 7, kind: input, shape index: {}]
  %s8 = inlined_call_operand.hbm [shape: f32[8,128], index: 8, kind: output, shape index: {}]
  %s9 = sld [smem:[#allocation0]]
  $region62: #{tpu_custom_call.1} parent=0
    _
  %s11 = ssub.s32 1, %s9
  %s12 = scalar_select 0, %s11, %s9
  $region1: #{tpu_custom_call.1} parent=0
    #allocation2 [shape = 'u8[512]{0}', space=smem, size = 0x200, scoped, tag = 'input window, operand 0, single buffered']
    #allocation3 [shape = 's32[1]{0}', space=sflag, size = 0x4, scoped, tag = 'scoped memory for tpu_custom_call.1']
    #allocation4 [shape = 's32[1]{0}', space=sflag, size = 0x4, scoped, tag = 'scoped memory for tpu_custom_call.1']
    #allocation5 [shape = 's32[1]{0}', space=sflag, size = 0x4, scoped, tag = 'scoped memory for tpu_custom_call.1']
    #allocation6 [shape = 'u8[4096]{0}', space=vmem, size = 0x1000, scoped, tag = 'input window, operand 1, single buffered']
    #allocation7 [shape = 'u8[4096]{0}', space=vmem, size = 0x1000, scoped, tag = 'input window, operand 2, single buffered']
    #allocation8 [shape = 's32[1]{0}', space=sflag, size = 0x4, scoped, tag = 'scoped memory for tpu_custom_call.1']
    #allocation9 [shape = 'u8[32768]{0}', space=vmem, size = 0x8000, scoped, tag = 'input window, operand 4, single buffered']
    #allocation10 [shape = 'u8[32768]{0}', space=vmem, size = 0x8000, scoped, tag = 'input window, operand 6, single buffered']
    #allocation11 [shape = 's32[1]{0}', space=sflag, size = 0x4, scoped, tag = 'scoped memory for tpu_custom_call.1']
    #allocation12 [shape = 'u8[4096]{0}', space=vmem, size = 0x1000, scoped, tag = 'output window, operand 0, single buffered']
    %13 = vsyncpa [#allocation5], 0
    %14 = vsyncpa [#allocation3], 0
    %15 = vsyncpa [#allocation8], 0
    %16 = vsyncpa [#allocation11], 0
    %17 = vsyncpa [#allocation4], 0
    // Predicated region
    $region2: #{tpu_custom_call.1} parent=1 // pred_check
      _
    $region3: #{tpu_custom_call.1} parent=1 // pred_check_branch
      %19 = sbr.rel (0) target = $region5
    $region4: #{tpu_custom_call.1} parent=1 // pred_region
      %s21 = ssub.s32 16, 16
      %22 = vsyncadd [#allocation5], %s21
      %25 = dma.hbm_to_smem %s0, 16, [#allocation2], [#allocation5]
    $region5: #{tpu_custom_call.1} parent=1 // pred_fallthru
      _
    // Predicated region
    $region6: #{tpu_custom_call.1} parent=1 // pred_check
      _
    $region7: #{tpu_custom_call.1} parent=1 // pred_check_branch
      %27 = sbr.rel (0) target = $region9
    $region8: #{tpu_custom_call.1} parent=1 // pred_region
      %s29 = ssub.s32 128, 128
      %30 = vsyncadd [#allocation3], %s29
      %s32 = sshll.u32 [#allocation6], 4
      %s33 = int_to_ptr.vmem [resolvable:$true] %s32
      %35 = dma.hbm_to_vmem [thread:$0]  %s1, 128, %s33, [#allocation3]
    $region9: #{tpu_custom_call.1} parent=1 // pred_fallthru
      _
    // Predicated region
    $region10: #{tpu_custom_call.1} parent=1 // pred_check
      _
    $region11: #{tpu_custom_call.1} parent=1 // pred_check_branch
      %37 = sbr.rel (0) target = $region13
    $region12: #{tpu_custom_call.1} parent=1 // pred_region
      %s39 = ssub.s32 128, 128
      %40 = vsyncadd [#allocation8], %s39
      %s41 = sshll.u32 [#allocation7], 4
      %s42 = int_to_ptr.vmem [resolvable:$true] %s41
      %47 = dma.hbm_to_vmem [thread:$0]  %s2, 128, %s42, [#allocation8], 64, 64, 4
    $region13: #{tpu_custom_call.1} parent=1 // pred_fallthru
      _
    // Predicated region
    $region14: #{tpu_custom_call.1} parent=1 // pred_check
      _
    $region15: #{tpu_custom_call.1} parent=1 // pred_check_branch
      %49 = sbr.rel (0) target = $region17
    $region16: #{tpu_custom_call.1} parent=1 // pred_region
      _
    $region17: #{tpu_custom_call.1} parent=1 // pred_fallthru
      _
    // Predicated region
    $region18: #{tpu_custom_call.1} parent=1 // pred_check
      _
    $region19: #{tpu_custom_call.1} parent=1 // pred_check_branch
      %51 = sbr.rel (0) target = $region21
    $region20: #{tpu_custom_call.1} parent=1 // pred_region
      %s53 = ssub.s32 1024, 1024
      %54 = vsyncadd [#allocation8], %s53
      %s55 = sshll.u32 [#allocation9], 4
      %s56 = int_to_ptr.vmem [resolvable:$true] %s55
      %61 = dma.hbm_to_vmem [thread:$0]  %s4, 1024, %s56, [#allocation8], 64, 64, 4
    $region21: #{tpu_custom_call.1} parent=1 // pred_fallthru
      _
    // Predicated region
    $region22: #{tpu_custom_call.1} parent=1 // pred_check
      _
    $region23: #{tpu_custom_call.1} parent=1 // pred_check_branch
      %63 = sbr.rel (0) target = $region25
    $region24: #{tpu_custom_call.1} parent=1 // pred_region
      _
    $region25: #{tpu_custom_call.1} parent=1 // pred_fallthru
      _
    // Predicated region
    $region26: #{tpu_custom_call.1} parent=1 // pred_check
      _
    $region27: #{tpu_custom_call.1} parent=1 // pred_check_branch
      %65 = sbr.rel (0) target = $region29
    $region28: #{tpu_custom_call.1} parent=1 // pred_region
      %s67 = ssub.s32 1024, 1024
      %68 = vsyncadd [#allocation11], %s67
      %s69 = sshll.u32 [#allocation10], 4
      %s70 = int_to_ptr.vmem [resolvable:$true] %s69
      %75 = dma.hbm_to_vmem [thread:$0]  %s6, 1024, %s70, [#allocation11], 64, 64, 4
    $region29: #{tpu_custom_call.1} parent=1 // pred_fallthru
      _
    // Predicated region
    $region30: #{tpu_custom_call.1} parent=1 // pred_check
      _
    $region31: #{tpu_custom_call.1} parent=1 // pred_check_branch
      %77 = sbr.rel (0) target = $region33
    $region32: #{tpu_custom_call.1} parent=1 // pred_region
      _
    $region33: #{tpu_custom_call.1} parent=1 // pred_fallthru
      _
    // Predicated region
    $region34: #{tpu_custom_call.1} parent=1 // pred_check
      _
    $region35: #{tpu_custom_call.1} parent=1 // pred_check_branch
      %79 = sbr.rel (0) target = $region37
    $region36: #{tpu_custom_call.1} parent=1 // pred_region
      %80 = dma.done [#allocation5], 16
    $region37: #{tpu_custom_call.1} parent=1 // pred_fallthru
      _
    // Predicated region
    $region38: #{tpu_custom_call.1} parent=1 // pred_check
      _
    $region39: #{tpu_custom_call.1} parent=1 // pred_check_branch
      %82 = sbr.rel (0) target = $region41
    $region40: #{tpu_custom_call.1} parent=1 // pred_region
      %83 = dma.done [#allocation3], 128
    $region41: #{tpu_custom_call.1} parent=1 // pred_fallthru
      _
    // Predicated region
    $region42: #{tpu_custom_call.1} parent=1 // pred_check
      _
    $region43: #{tpu_custom_call.1} parent=1 // pred_check_branch
      %85 = sbr.rel (0) target = $region45
    $region44: #{tpu_custom_call.1} parent=1 // pred_region
      %86 = dma.done [#allocation8], 128
    $region45: #{tpu_custom_call.1} parent=1 // pred_fallthru
      _
    // Predicated region
    $region46: #{tpu_custom_call.1} parent=1 // pred_check
      _
    $region47: #{tpu_custom_call.1} parent=1 // pred_check_branch
      %88 = sbr.rel (0) target = $region49
    $region48: #{tpu_custom_call.1} parent=1 // pred_region
      %89 = dma.done [#allocation8], 1024
    $region49: #{tpu_custom_call.1} parent=1 // pred_fallthru
      _
    // Predicated region
    $region50: #{tpu_custom_call.1} parent=1 // pred_check
      _
    $region51: #{tpu_custom_call.1} parent=1 // pred_check_branch
      %91 = sbr.rel (0) target = $region53
    $region52: #{tpu_custom_call.1} parent=1 // pred_region
      %92 = dma.done [#allocation11], 1024
    $region53: #{tpu_custom_call.1} parent=1 // pred_fallthru
      _
    %93 = sfence
    %s95 = sld [smem:[#allocation2]]
    %s96 = sld [smem:[#allocation2 + $0x1]]
    %v97 = vld [vmem:[#allocation6] sm:$0xff]
    %v98 = vpack.c.bf16 %v97, %v97
    %v99 = vld [vmem:[#allocation7] sm:$0xf]
    %v100 = vld [vmem:[#allocation7 + $0x4] sm:$0xf]
    %v101 = vld [vmem:[%s3] sm:$0x1]
    %v103 = vlaneseq
    %v104 = vshrl.u32 %v103, 7
    %v105 = vsub.s32 0, %v104
    %v106 = vrot.slane %v101, %v105
    %v110 = vunpack.c.l.b16 %v99
    %v111 = vunpack.c.l.b16 %v100
    %v112 = vpack.c.b16 %v111, %v110
    %vm114 = vcmask 130048
    %v116 = vsel %vm114, %v98, 0
    %118 = vmatprep.subr.bf16.mxu0 0
    %119 = vmatpush1.bf16.msra.mxu0 %v112
    %120 = vmatprep.subr.bf16.mxu0 0
    %121 = vmatpush1.bf16.msra.mxu0 0
    %122 = vmatprep.subr.bf16.mxu0 0
    %123 = vmatpush1.bf16.msra.mxu0 0
    %124 = vmatprep.subr.bf16.mxu0 0
    %125 = vmatpush1.bf16.msra.mxu0 0
    %126 = vmatprep.subr.bf16.mxu0 0
    %127 = vmatpush1.bf16.msra.mxu0 0
    %128 = vmatprep.subr.bf16.mxu0 0
    %129 = vmatpush1.bf16.msra.mxu0 0
    %130 = vmatprep.subr.bf16.mxu0 0
    %131 = vmatpush1.bf16.msra.mxu0 0
    %132 = vmatprep.subr.bf16.mxu0 0
    %133 = vmatpush1.bf16.msra.mxu0 0
    %134 = vmatprep.subr.bf16.mxu0 0
    %135 = vmatpush1.bf16.msra.mxu0 0
    %136 = vmatprep.subr.bf16.mxu0 0
    %137 = vmatpush1.bf16.msra.mxu0 0
    %138 = vmatprep.subr.bf16.mxu0 0
    %139 = vmatpush1.bf16.msra.mxu0 0
    %140 = vmatprep.subr.bf16.mxu0 0
    %141 = vmatpush1.bf16.msra.mxu0 0
    %142 = vmatprep.subr.bf16.mxu0 0
    %143 = vmatpush1.bf16.msra.mxu0 0
    %144 = vmatprep.subr.bf16.mxu0 0
    %145 = vmatpush1.bf16.msra.mxu0 0
    %146 = vmatprep.subr.bf16.mxu0 0
    %147 = vmatpush1.bf16.msra.mxu0 0
    %148 = vmatprep.subr.bf16.mxu0 0
    %149 = vmatpush1.bf16.msra.mxu0 0
    %150 = vmatprep.mubr.bf16.mxu0 0
    %151 = vmatmul.mubr.bf16.gmra.mrb[0].mxu0 %v116
    %v152 = vpop.f32.mrb[0].mxu0
    %v153 = vadd.f32 %v106, %v152
    %v154 = vpop.f32.mrb[0].mxu0
    %v155 = vpop.f32.mrb[0].mxu0
    %v156 = vpop.f32.mrb[0].mxu0
    %157 = vdwg.mxu0
    %vm158 = vcmp.ge.f32.partialorder %v153, 0.0
    %v159 = vstv %s95
    %v160 = vmul.f32 %v159, %v153
    %v161 = vsel %vm158, %v153, %v160
    %v162 = vpack.c.bf16 %v161, %v161
    %v163 = vld [vmem:[#allocation9] sm:$0xf]
    %v164 = vld [vmem:[#allocation9 + $0x4] sm:$0xf]
    %v165 = vld [vmem:[#allocation9 + $0x8] sm:$0xf]
    %v166 = vld [vmem:[#allocation9 + $0xc] sm:$0xf]
    %v167 = vld [vmem:[#allocation9 + $0x10] sm:$0xf]
    %v168 = vld [vmem:[#allocation9 + $0x14] sm:$0xf]
    %v169 = vld [vmem:[#allocation9 + $0x18] sm:$0xf]
    %v170 = vld [vmem:[#allocation9 + $0x1c] sm:$0xf]
    %v171 = vld [vmem:[#allocation9 + $0x20] sm:$0xf]
    %v172 = vld [vmem:[#allocation9 + $0x24] sm:$0xf]
    %v173 = vld [vmem:[#allocation9 + $0x28] sm:$0xf]
    %v174 = vld [vmem:[#allocation9 + $0x2c] sm:$0xf]
    %v175 = vld [vmem:[#allocation9 + $0x30] sm:$0xf]
    %v176 = vld [vmem:[#allocation9 + $0x34] sm:$0xf]
    %v177 = vld [vmem:[#allocation9 + $0x38] sm:$0xf]
    %v178 = vld [vmem:[#allocation9 + $0x3c] sm:$0xf]
    %v179 = vld [vmem:[%s5] sm:$0x1]
    %v181 = vlaneseq
    %v182 = vshrl.u32 %v181, 7
    %v183 = vsub.s32 0, %v182
    %v184 = vrot.slane %v179, %v183
    %v202 = vunpack.c.l.b16 %v163
    %v203 = vunpack.c.l.b16 %v164
    %v204 = vunpack.c.l.b16 %v165
    %v205 = vunpack.c.l.b16 %v166
    %v206 = vunpack.c.l.b16 %v167
    %v207 = vunpack.c.l.b16 %v168
    %v208 = vunpack.c.l.b16 %v169
    %v209 = vunpack.c.l.b16 %v170
    %v210 = vunpack.c.l.b16 %v171
    %v211 = vunpack.c.l.b16 %v172
    %v212 = vunpack.c.l.b16 %v173
    %v213 = vunpack.c.l.b16 %v174
    %v214 = vunpack.c.l.b16 %v175
    %v215 = vunpack.c.l.b16 %v176
    %v216 = vunpack.c.l.b16 %v177
    %v217 = vunpack.c.l.b16 %v178
    %v218 = vpack.c.b16 %v203, %v202
    %v219 = vpack.c.b16 %v205, %v204
    %v220 = vpack.c.b16 %v207, %v206
    %v221 = vpack.c.b16 %v209, %v208
    %v222 = vpack.c.b16 %v211, %v210
    %v223 = vpack.c.b16 %v213, %v212
    %v224 = vpack.c.b16 %v215, %v214
    %v225 = vpack.c.b16 %v217, %v216
    %234 = vmatprep.subr.bf16.mxu0 0
    %235 = vmatpush1.bf16.msra.mxu0 %v218
    %236 = vmatprep.subr.bf16.mxu0 0
    %237 = vmatpush1.bf16.msra.mxu0 %v219
    %238 = vmatprep.subr.bf16.mxu0 0
    %239 = vmatpush1.bf16.msra.mxu0 %v220
    %240 = vmatprep.subr.bf16.mxu0 0
    %241 = vmatpush1.bf16.msra.mxu0 %v221
    %242 = vmatprep.subr.bf16.mxu0 0
    %243 = vmatpush1.bf16.msra.mxu0 %v222
    %244 = vmatprep.subr.bf16.mxu0 0
    %245 = vmatpush1.bf16.msra.mxu0 %v223
    %246 = vmatprep.subr.bf16.mxu0 0
    %247 = vmatpush1.bf16.msra.mxu0 %v224
    %248 = vmatprep.subr.bf16.mxu0 0
    %249 = vmatpush1.bf16.msra.mxu0 %v225
    %250 = vmatprep.subr.bf16.mxu0 0
    %251 = vmatpush1.bf16.msra.mxu0 0
    %252 = vmatprep.subr.bf16.mxu0 0
    %253 = vmatpush1.bf16.msra.mxu0 0
    %254 = vmatprep.subr.bf16.mxu0 0
    %255 = vmatpush1.bf16.msra.mxu0 0
    %256 = vmatprep.subr.bf16.mxu0 0
    %257 = vmatpush1.bf16.msra.mxu0 0
    %258 = vmatprep.subr.bf16.mxu0 0
    %259 = vmatpush1.bf16.msra.mxu0 0
    %260 = vmatprep.subr.bf16.mxu0 0
    %261 = vmatpush1.bf16.msra.mxu0 0
    %262 = vmatprep.subr.bf16.mxu0 0
    %263 = vmatpush1.bf16.msra.mxu0 0
    %264 = vmatprep.subr.bf16.mxu0 0
    %265 = vmatpush1.bf16.msra.mxu0 0
    %266 = vmatprep.mubr.bf16.mxu0 0
    %267 = vmatmul.mubr.bf16.gmra.mrb[0].mxu0 %v162
    %v268 = vpop.f32.mrb[0].mxu0
    %v269 = vadd.f32 %v184, %v268
    %v270 = vpop.f32.mrb[0].mxu0
    %v271 = vpop.f32.mrb[0].mxu0
    %v272 = vpop.f32.mrb[0].mxu0
    %273 = vdwg.mxu0
    %vm274 = vcmp.ge.f32.partialorder %v269, 0.0
    %v275 = vstv %s96
    %v276 = vmul.f32 %v275, %v269
    %v277 = vsel %vm274, %v269, %v276
    %v278 = vpack.c.bf16 %v277, %v277
    %v279 = vld [vmem:[#allocation10] sm:$0xf]
    %v280 = vld [vmem:[#allocation10 + $0x4] sm:$0xf]
    %v281 = vld [vmem:[#allocation10 + $0x8] sm:$0xf]
    %v282 = vld [vmem:[#allocation10 + $0xc] sm:$0xf]
    %v283 = vld [vmem:[#allocation10 + $0x10] sm:$0xf]
    %v284 = vld [vmem:[#allocation10 + $0x14] sm:$0xf]
    %v285 = vld [vmem:[#allocation10 + $0x18] sm:$0xf]
    %v286 = vld [vmem:[#allocation10 + $0x1c] sm:$0xf]
    %v287 = vld [vmem:[#allocation10 + $0x20] sm:$0xf]
    %v288 = vld [vmem:[#allocation10 + $0x24] sm:$0xf]
    %v289 = vld [vmem:[#allocation10 + $0x28] sm:$0xf]
    %v290 = vld [vmem:[#allocation10 + $0x2c] sm:$0xf]
    %v291 = vld [vmem:[#allocation10 + $0x30] sm:$0xf]
    %v292 = vld [vmem:[#allocation10 + $0x34] sm:$0xf]
    %v293 = vld [vmem:[#allocation10 + $0x38] sm:$0xf]
    %v294 = vld [vmem:[#allocation10 + $0x3c] sm:$0xf]
    %v295 = vld [vmem:[%s7] sm:$0x1]
    %v297 = vlaneseq
    %v298 = vshrl.u32 %v297, 7
    %v299 = vsub.s32 0, %v298
    %v300 = vrot.slane %v295, %v299
    %v318 = vunpack.c.l.b16 %v279
    %v319 = vunpack.c.l.b16 %v280
    %v320 = vunpack.c.l.b16 %v281
    %v321 = vunpack.c.l.b16 %v282
    %v322 = vunpack.c.l.b16 %v283
    %v323 = vunpack.c.l.b16 %v284
    %v324 = vunpack.c.l.b16 %v285
    %v325 = vunpack.c.l.b16 %v286
    %v326 = vunpack.c.l.b16 %v287
    %v327 = vunpack.c.l.b16 %v288
    %v328 = vunpack.c.l.b16 %v289
    %v329 = vunpack.c.l.b16 %v290
    %v330 = vunpack.c.l.b16 %v291
    %v331 = vunpack.c.l.b16 %v292
    %v332 = vunpack.c.l.b16 %v293
    %v333 = vunpack.c.l.b16 %v294
    %v334 = vpack.c.b16 %v319, %v318
    %v335 = vpack.c.b16 %v321, %v320
    %v336 = vpack.c.b16 %v323, %v322
    %v337 = vpack.c.b16 %v325, %v324
    %v338 = vpack.c.b16 %v327, %v326
    %v339 = vpack.c.b16 %v329, %v328
    %v340 = vpack.c.b16 %v331, %v330
    %v341 = vpack.c.b16 %v333, %v332
    %350 = vmatprep.subr.bf16.mxu0 0
    %351 = vmatpush1.bf16.msra.mxu0 %v334
    %352 = vmatprep.subr.bf16.mxu0 0
    %353 = vmatpush1.bf16.msra.mxu0 %v335
    %354 = vmatprep.subr.bf16.mxu0 0
    %355 = vmatpush1.bf16.msra.mxu0 %v336
    %356 = vmatprep.subr.bf16.mxu0 0
    %357 = vmatpush1.bf16.msra.mxu0 %v337
    %358 = vmatprep.subr.bf16.mxu0 0
    %359 = vmatpush1.bf16.msra.mxu0 %v338
    %360 = vmatprep.subr.bf16.mxu0 0
    %361 = vmatpush1.bf16.msra.mxu0 %v339
    %362 = vmatprep.subr.bf16.mxu0 0
    %363 = vmatpush1.bf16.msra.mxu0 %v340
    %364 = vmatprep.subr.bf16.mxu0 0
    %365 = vmatpush1.bf16.msra.mxu0 %v341
    %366 = vmatprep.subr.bf16.mxu0 0
    %367 = vmatpush1.bf16.msra.mxu0 0
    %368 = vmatprep.subr.bf16.mxu0 0
    %369 = vmatpush1.bf16.msra.mxu0 0
    %370 = vmatprep.subr.bf16.mxu0 0
    %371 = vmatpush1.bf16.msra.mxu0 0
    %372 = vmatprep.subr.bf16.mxu0 0
    %373 = vmatpush1.bf16.msra.mxu0 0
    %374 = vmatprep.subr.bf16.mxu0 0
    %375 = vmatpush1.bf16.msra.mxu0 0
    %376 = vmatprep.subr.bf16.mxu0 0
    %377 = vmatpush1.bf16.msra.mxu0 0
    %378 = vmatprep.subr.bf16.mxu0 0
    %379 = vmatpush1.bf16.msra.mxu0 0
    %380 = vmatprep.subr.bf16.mxu0 0
    %381 = vmatpush1.bf16.msra.mxu0 0
    %382 = vmatprep.mubr.bf16.mxu0 0
    %383 = vmatmul.mubr.bf16.gmra.mrb[0].mxu0 %v278
    %v384 = vpop.f32.mrb[0].mxu0
    %v385 = vadd.f32 %v300, %v384
    %v386 = vpop.f32.mrb[0].mxu0
    %v387 = vpop.f32.mrb[0].mxu0
    %v388 = vpop.f32.mrb[0].mxu0
    %389 = vdwg.mxu0
    %390 = vst [vmem:[#allocation12] sm:$0xff] %v385
    // Predicated region
    $region54: #{tpu_custom_call.1} parent=1 // pred_check
      _
    $region55: #{tpu_custom_call.1} parent=1 // pred_check_branch
      %392 = sbr.rel (0) target = $region57
    $region56: #{tpu_custom_call.1} parent=1 // pred_region
      %s394 = ssub.s32 128, 128
      %395 = vsyncadd [#allocation4], %s394
      %s397 = sshll.u32 [#allocation12], 4
      %s398 = int_to_ptr.vmem [resolvable:$true] %s397
      %400 = dma.vmem_to_hbm [thread:$0]  %s398, 128, %s8, [#allocation4]
    $region57: #{tpu_custom_call.1} parent=1 // pred_fallthru
      _
    // Predicated region
    $region58: #{tpu_custom_call.1} parent=1 // pred_check
      _
    $region59: #{tpu_custom_call.1} parent=1 // pred_check_branch
      %402 = sbr.rel (0) target = $region61
    $region60: #{tpu_custom_call.1} parent=1 // pred_region
      %403 = dma.done [#allocation4], 128
    $region61: #{tpu_custom_call.1} parent=1 // pred_fallthru
      _
    %404 = vsyncpa [#allocation3], 1
    %405 = vsyncpa [#allocation8], 1
    %406 = vsyncpa [#allocation11], 1
    %407 = vsyncpa [#allocation4], 1
    %408 = vsyncpa [#allocation5], 1

</llo_original>
